<compile_context>
chip_gen: v5e
topology: v5e:2x2
jax: 0.10.0
libtpu: 0.0.40
codegen_flags: <defaults>
</compile_context>

<pallas_src>
from math import sqrt

import jax
import jax.numpy as jnp
from jax.experimental import pallas as pl
from jax.experimental.pallas import tpu as pltpu


def _round_up(x, m):
    return ((x + m - 1) // m) * m


def _amb_kernel(x_ref, mem_s_ref, mem_v_ref, o_ref):
    # x_ref:     (TILE_N, D) row tile of the flattened (B*N, D) input
    # mem_s_ref: (D, M) bf16  memory bank pre-scaled by 1/sqrt(D) (VMEM-resident)
    # mem_v_ref: (M, D) bf16  memory bank in value layout         (VMEM-resident)
    # o_ref:     (TILE_N, D) output tile
    x16 = x_ref[...].astype(jnp.bfloat16)

    # Logits over the memory slots: bf16 operands, f32 accumulation on the MXU.
    logits = jnp.dot(x16, mem_s_ref[...],
                     preferred_element_type=jnp.float32)                    # (TILE_N, M)

    # Numerically-stable softmax over the memory axis (last dim), f32, exact divide.
    m_max = jnp.max(logits, axis=-1, keepdims=True)
    p = jnp.exp(logits - m_max)
    denom = jnp.sum(p, axis=-1, keepdims=True)
    attn = p / denom                                                         # (TILE_N, M)

    # Re-read memory values with the attention weights (bf16 operands, f32 acc).
    out = jnp.dot(attn.astype(jnp.bfloat16), mem_v_ref[...],
                  preferred_element_type=jnp.float32)                        # (TILE_N, D)
    o_ref[...] = out.astype(o_ref.dtype)


def attention_memory_bank(x, mem):
    """x: (B, N, D), mem: (1, D, M)  ->  (B, N, D), matching the PyTorch module."""
    B, N, D = x.shape
    _, Dm, M = mem.shape
    assert Dm == D

    # Scale in f32 first, then cast to bf16 (avoid compounding rounding).
    inv_sqrt_d = 1.0 / sqrt(float(D))
    mem_f32 = mem[0].astype(jnp.float32)
    mem_s = (mem_f32 * inv_sqrt_d).astype(jnp.bfloat16)           # (D, M) for logits
    mem_v = jnp.transpose(mem_f32, (1, 0)).astype(jnp.bfloat16)   # (M, D) for values

    rows = B * N
    itemsize = jnp.dtype(x.dtype).itemsize
    m_lanes = max(_round_up(M, 128), 128)

    # Generation-aware VMEM ceiling (v7x: 64 MiB physical -> ~40 MiB ceiling;
    # v5e/v6e: 128 MiB -> up to 80-96 MiB).
    try:
        vmem_cap = int(pltpu.get_tpu_info().vmem_capacity_bytes)
    except Exception:
        vmem_cap = 128 * 1024 * 1024
    vmem_ceiling = min(96 * 1024 * 1024, int(0.625 * vmem_cap))

    # D-aware tile size: target a multi-MiB streaming block, clamped to the
    # actual number of rows and to what fits under the VMEM ceiling.
    target_tile_bytes = 6 * 1024 * 1024
    tile_n = target_tile_bytes // max(D * itemsize, 1)
    tile_n = max(512, min(4096, tile_n))
    tile_n = min(tile_n, _round_up(rows, 8))
    tile_n = max(8, _round_up(tile_n, 8))

    def working_set(tn):
        return (
            2 * 2 * tn * D * itemsize        # double-buffered x + out tiles
            + 2 * 2 * D * M * 2              # both bf16 bank copies, possibly double-buffered
            + 4 * tn * m_lanes * 4           # logits / exp / attn f32 intermediates (padded lanes)
        )

    while tile_n > 8 and working_set(tile_n) > vmem_ceiling:
        tile_n = max(8, _round_up(tile_n // 2, 8))

    rows_p = _round_up(rows, tile_n)
    x2 = x.reshape(rows, D)
    if rows_p != rows:
        x2 = jnp.pad(x2, ((0, rows_p - rows), (0, 0)))

    grid = (rows_p // tile_n,)
    vmem_limit = int(min(vmem_ceiling,
                         max(32 * 1024 * 1024, 2 * working_set(tile_n))))

    out = pl.pallas_call(
        _amb_kernel,
        out_shape=jax.ShapeDtypeStruct((rows_p, D), x.dtype),
        grid_spec=pltpu.PrefetchScalarGridSpec(
            num_scalar_prefetch=0,
            grid=grid,
            in_specs=[
                pl.BlockSpec((tile_n, D), lambda i: (i, 0)),
                pl.BlockSpec((D, M), lambda i: (0, 0)),   # grid-invariant -> resident
                pl.BlockSpec((M, D), lambda i: (0, 0)),   # grid-invariant -> resident
            ],
            out_specs=pl.BlockSpec((tile_n, D), lambda i: (i, 0)),
        ),
        compiler_params=pltpu.CompilerParams(
            dimension_semantics=("parallel",),
            vmem_limit_bytes=vmem_limit,
        ),
    )(x2, mem_s, mem_v)

    return out[:rows].reshape(B, N, D)


def _reference(x, mem):
    # Pure-JAX reference mirroring the PyTorch code line-by-line (all f32).
    B, N, D = x.shape
    m = jnp.broadcast_to(mem, (B,) + mem.shape[1:])        # (B, D, M)
    m_key = jnp.transpose(m, (0, 2, 1))                    # (B, M, D)
    x_ = jnp.transpose(x, (0, 2, 1))                       # (B, D, N)
    logits = jnp.einsum("bmd,bdn->bmn", m_key, x_) / sqrt(float(D))
    attn = jax.nn.softmax(logits, axis=1)                  # softmax over M
    x_new = jnp.einsum("bdm,bmn->bdn", jnp.transpose(m_key, (0, 2, 1)), attn)
    return jnp.transpose(x_new, (0, 2, 1))                 # (B, N, D)


if __name__ == "__main__":
    B, N, D, M = 2, 8, 32, 16
    key = jax.random.PRNGKey(0)
    kx, kmem = jax.random.split(key)
    x = jax.random.normal(kx, (B, N, D), dtype=jnp.float32)
    # nn.Parameter(torch.FloatTensor(1, D, M).normal_(0.0, 1.0)) -> standard normal
    mem = jax.random.normal(kmem, (1, D, M), dtype=jnp.float32)

    out = attention_memory_bank(x, mem)
    out = jax.block_until_ready(out)

    ref = _reference(x, mem)
    assert out.shape == (B, N, D)
    # Tolerance covers the bf16 MXU operands (bank + x tile cast to bf16 with
    # f32 accumulation); the softmax normalization itself is exact f32.
    assert jnp.allclose(out, ref, atol=3e-2, rtol=3e-2), "mismatch vs reference"
    print("KERNEL_OK")
</pallas_src>

<mosaic_0001>
module attributes {stable_mosaic.version = 11 : i64} {
  func.func @_amb_kernel(%arg0: i32, %arg1: memref<16x32xf32, #tpu.memory_space<vmem>>, %arg2: memref<32x16xbf16, #tpu.memory_space<vmem>>, %arg3: memref<16x32xbf16, #tpu.memory_space<vmem>>, %arg4: memref<16x32xf32, #tpu.memory_space<vmem>>) attributes {dimension_semantics = [#tpu.dimension_semantics<parallel>], iteration_bounds = array<i64: 1>, scalar_prefetch = 0 : i64, scratch_operands = 0 : i64, tpu.core_type = #tpu.core_type<tc>, window_params = [{transform_indices = @transform_0, window_bounds = array<i64: 16, 32>}, {pipeline_mode = #tpu.pipeline_mode<synchronous>, transform_indices = @transform_1, window_bounds = array<i64: 32, 16>}, {pipeline_mode = #tpu.pipeline_mode<synchronous>, transform_indices = @transform_2, window_bounds = array<i64: 16, 32>}, {transform_indices = @transform_3, window_bounds = array<i64: 16, 32>}]} {
    %c0 = arith.constant 0 : index
    %c0_0 = arith.constant 0 : index
    %0 = vector.load %arg1[%c0, %c0_0] : memref<16x32xf32, #tpu.memory_space<vmem>>, vector<16x32xf32>
    %1 = arith.truncf %0 : vector<16x32xf32> to vector<16x32xbf16>
    %c0_1 = arith.constant 0 : index
    %c0_2 = arith.constant 0 : index
    %2 = vector.load %arg2[%c0_1, %c0_2] : memref<32x16xbf16, #tpu.memory_space<vmem>>, vector<32x16xbf16>
    %cst = arith.constant dense<0.000000e+00> : vector<16x16xf32>
    %3 = tpu.matmul %1, %2, %cst {dimension_numbers = #tpu.dot_dimension_numbers<[1], [0], [0], [1], [0, 0, 1, 1], [], []>} : vector<16x32xbf16>, vector<32x16xbf16>, vector<16x16xf32> -> vector<16x16xf32>
    %cst_3 = arith.constant dense<0xFF800000> : vector<16xf32>
    %4 = vector.multi_reduction <maximumf>, %3, %cst_3 [1] : vector<16x16xf32> to vector<16xf32>
    %5 = vector.shape_cast %4 : vector<16xf32> to vector<16x1xf32>
    %6 = vector.broadcast %5 : vector<16x1xf32> to vector<16x16xf32>
    %7 = arith.subf %3, %6 : vector<16x16xf32>
    %8 = math.exp %7 : vector<16x16xf32>
    %cst_4 = arith.constant dense<0.000000e+00> : vector<16xf32>
    %9 = vector.multi_reduction <add>, %8, %cst_4 [1] : vector<16x16xf32> to vector<16xf32>
    %10 = vector.shape_cast %9 : vector<16xf32> to vector<16x1xf32>
    %11 = vector.broadcast %10 : vector<16x1xf32> to vector<16x16xf32>
    %12 = arith.divf %8, %11 : vector<16x16xf32>
    %13 = arith.truncf %12 : vector<16x16xf32> to vector<16x16xbf16>
    %c0_5 = arith.constant 0 : index
    %c0_6 = arith.constant 0 : index
    %14 = vector.load %arg3[%c0_5, %c0_6] : memref<16x32xbf16, #tpu.memory_space<vmem>>, vector<16x32xbf16>
    %cst_7 = arith.constant dense<0.000000e+00> : vector<16x32xf32>
    %15 = tpu.matmul %13, %14, %cst_7 {dimension_numbers = #tpu.dot_dimension_numbers<[1], [0], [0], [1], [0, 0, 1, 1], [], []>} : vector<16x16xbf16>, vector<16x32xbf16>, vector<16x32xf32> -> vector<16x32xf32>
    %c0_8 = arith.constant 0 : index
    %c0_9 = arith.constant 0 : index
    %16 = vector.load %arg4[%c0_8, %c0_9] : memref<16x32xf32, #tpu.memory_space<vmem>>, vector<16x32xf32>
    tpu.vector_store %arg4[%c0_8, %c0_9], %15 {strides = array<i32>} : memref<16x32xf32, #tpu.memory_space<vmem>>, vector<16x32xf32>,
    return
  }
  func.func @transform_0(%arg0: i32) -> (i32, i32) {
    %c0_i32 = arith.constant 0 : i32
    %c0_i32_0 = arith.constant 0 : i32
    return %arg0, %c0_i32 : i32, i32
  }
  func.func @transform_1(%arg0: i32) -> (i32, i32) {
    %c0_i32 = arith.constant 0 : i32
    %c0_i32_0 = arith.constant 0 : i32
    %c0_i32_1 = arith.constant 0 : i32
    return %c0_i32, %c0_i32_0 : i32, i32
  }
  func.func @transform_2(%arg0: i32) -> (i32, i32) {
    %c0_i32 = arith.constant 0 : i32
    %c0_i32_0 = arith.constant 0 : i32
    %c0_i32_1 = arith.constant 0 : i32
    return %c0_i32, %c0_i32_0 : i32, i32
  }
  func.func @transform_3(%arg0: i32) -> (i32, i32) {
    %c0_i32 = arith.constant 0 : i32
    %c0_i32_0 = arith.constant 0 : i32
    return %arg0, %c0_i32 : i32, i32
  }
}

</mosaic_0001>

<llo_original>
// kernel: tpu_custom_call.1
$region0: #{tpu_custom_call.1}
  #allocation0 [shape = 'u32[]', space=smem, size = 0x4, offset = 0x4, fixed_abs, tag = 'smem constant byte address 0x4 - core index']
  #allocation1 [shape = 'u32[72,128]{1,0:T(1,128)}', space=vmem, size = 0x9000, scoped, tag = 'internal scratch']
  %s0 = inlined_call_operand.vmem [shape: f32[16,32], index: 0, kind: input, shape index: {}]
  %s1 = inlined_call_operand.vmem [shape: bf16[32,16], index: 1, kind: input, shape index: {}]
  %s2 = inlined_call_operand.vmem [shape: bf16[16,32], index: 2, kind: input, shape index: {}]
  %s3 = inlined_call_operand.hbm [shape: f32[16,32], index: 3, kind: output, shape index: {}]
  %s4 = sld [smem:[#allocation0]]
  $region22: #{tpu_custom_call.1} parent=0
    _
  %s6 = ssub.s32 1, %s4
  %s7 = scalar_select 0, %s6, %s4
  $region1: #{tpu_custom_call.1} parent=0
    #allocation2 [shape = 'u8[8192]{0}', space=vmem, size = 0x2000, scoped, tag = 'output window, operand 0, single buffered']
    #allocation3 [shape = 's32[1]{0}', space=sflag, size = 0x4, scoped, tag = 'scoped memory for tpu_custom_call.1']
    %8 = vsyncpa [#allocation3], 0
    // Predicated region
    $region2: #{tpu_custom_call.1} parent=1 // pred_check
      _
    $region3: #{tpu_custom_call.1} parent=1 // pred_check_branch
      %10 = sbr.rel (0) target = $region5
    $region4: #{tpu_custom_call.1} parent=1 // pred_region
      _
    $region5: #{tpu_custom_call.1} parent=1 // pred_fallthru
      _
    // Predicated region
    $region6: #{tpu_custom_call.1} parent=1 // pred_check
      _
    $region7: #{tpu_custom_call.1} parent=1 // pred_check_branch
      %12 = sbr.rel (0) target = $region9
    $region8: #{tpu_custom_call.1} parent=1 // pred_region
      _
    $region9: #{tpu_custom_call.1} parent=1 // pred_fallthru
      _
    // Predicated region
    $region10: #{tpu_custom_call.1} parent=1 // pred_check
      _
    $region11: #{tpu_custom_call.1} parent=1 // pred_check_branch
      %14 = sbr.rel (0) target = $region13
    $region12: #{tpu_custom_call.1} parent=1 // pred_region
      _
    $region13: #{tpu_custom_call.1} parent=1 // pred_fallthru
      _
    %v16 = vld [vmem:[%s0] sm:$0xff]
    %v17 = vld [vmem:[%s0 + $0x8] sm:$0xff]
    %v18 = vpack.c.bf16 %v17, %v16
    %v19 = vld [vmem:[%s1] sm:$0xf]
    %v20 = vld [vmem:[%s1 + $0x4] sm:$0xf]
    %v21 = vld [vmem:[%s1 + $0x8] sm:$0xf]
    %v22 = vld [vmem:[%s1 + $0xc] sm:$0xf]
    %v27 = vunpack.c.l.b16 %v19
    %v28 = vunpack.c.l.b16 %v20
    %v29 = vunpack.c.l.b16 %v21
    %v30 = vunpack.c.l.b16 %v22
    %v31 = vpack.c.b16 %v28, %v27
    %v32 = vpack.c.b16 %v30, %v29
    %vm35 = vcmask 261120
    %v37 = vsel %vm35, %v18, 0
    %39 = vmatpush.bf16.msra.mxu0 0
    %40 = vmatpush.bf16.msra.mxu0 0
    %41 = vmatpush.bf16.msra.mxu0 0
    %42 = vmatpush.bf16.msra.mxu0 0
    %43 = vmatpush.bf16.msra.mxu0 0
    %44 = vmatpush.bf16.msra.mxu0 0
    %45 = vmatpush.bf16.msra.mxu0 %v32
    %46 = vmatpush.bf16.msra.mxu0 %v31
    %47 = vmatmul.bf16.gmra.mxu0 %v37
    %v48 = vpop.f32.mrf.mxu0
    %v49 = vadd.f32 0.0, %v48
    %v50 = vpop.f32.mrf.mxu0
    %v51 = vadd.f32 0.0, %v50
    %52 = vdwg.mxu0
    %vm53 = vcmask 130048
    %v54 = vsel %vm53, %v49, -inf
    %55 = vmax.xlane.f32.xlu0 %v54
    %v56 = vpop.xlane.xlu0 %55
    %v57 = vsel %vm53, %v51, -inf
    %58 = vmax.xlane.f32.xlu0 %v57
    %v59 = vpop.xlane.xlu0 %58
    %v60 = vsub.f32 %v49, %v56
    %v61 = vsub.f32 %v51, %v59
    %v62 = vmul.f32 %v60, 1.442695
    %v63 = vpow.pop %v62
    %v64 = vmul.f32 %v61, 1.442695
    %v65 = vpow.pop %v64
    %v66 = vsel %vm53, %v63, 0.0
    %67 = vadd.xlane.f32.xlu0 %v66
    %v68 = vpop.xlane.xlu0 %67
    %v69 = vsel %vm53, %v65, 0.0
    %70 = vadd.xlane.f32.xlu0 %v69
    %v71 = vpop.xlane.xlu0 %70
    %v72 = vrcp.pop %v68
    %v73 = vmul.f32 %v68, %v72
    %v74 = vsub.f32 1.0, %v73
    %v75 = vmul.f32 %v72, %v74
    %v76 = vadd.f32 %v72, %v75
    %vm77 = vweird.f32 %v68
    %vm78 = vweird.f32 %v72
    %vm79 = vmor %vm77, %vm78
    %v80 = vsel %vm79, %v72, %v76
    %v81 = vand.u32 2147483647, %v68
    %vm82 = vcmp.eq.f32.partialorder %v81, 8.507059e+37
    %v83 = vand.u32 %v68, 2147483648
    %v84 = vor.u32 1.1754944e-38, %v83
    %v85 = vsel %vm82, %v84, %v80
    %v86 = vmul.f32 %v63, %v85
    %v87 = vrcp.pop %v71
    %v88 = vmul.f32 %v71, %v87
    %v89 = vsub.f32 1.0, %v88
    %v90 = vmul.f32 %v87, %v89
    %v91 = vadd.f32 %v87, %v90
    %vm92 = vweird.f32 %v71
    %vm93 = vweird.f32 %v87
    %vm94 = vmor %vm92, %vm93
    %v95 = vsel %vm94, %v87, %v91
    %v96 = vand.u32 2147483647, %v71
    %vm97 = vcmp.eq.f32.partialorder %v96, 8.507059e+37
    %v98 = vand.u32 %v71, 2147483648
    %v99 = vor.u32 1.1754944e-38, %v98
    %v100 = vsel %vm97, %v99, %v95
    %v101 = vmul.f32 %v65, %v100
    %v102 = vpack.c.bf16 %v101, %v86
    %v103 = vld [vmem:[%s2] sm:$0xf]
    %v104 = vld [vmem:[%s2 + $0x4] sm:$0xf]
    %v107 = vunpack.c.l.b16 %v103
    %v108 = vunpack.c.l.b16 %v104
    %v109 = vpack.c.b16 %v108, %v107
    %v112 = vsel %vm53, %v102, 0
    %114 = vmatpush.bf16.msra.mxu0 0
    %115 = vmatpush.bf16.msra.mxu0 0
    %116 = vmatpush.bf16.msra.mxu0 0
    %117 = vmatpush.bf16.msra.mxu0 0
    %118 = vmatpush.bf16.msra.mxu0 0
    %119 = vmatpush.bf16.msra.mxu0 0
    %120 = vmatpush.bf16.msra.mxu0 0
    %121 = vmatpush.bf16.msra.mxu0 %v109
    %122 = vmatmul.bf16.gmra.mxu0 %v112
    %v123 = vpop.f32.mrf.mxu0
    %v124 = vadd.f32 0.0, %v123
    %v125 = vpop.f32.mrf.mxu0
    %v126 = vadd.f32 0.0, %v125
    %127 = vdwg.mxu0
    %128 = vst.msk [vmem:[#allocation2] sm:$0xff] %vm35, %v124
    %129 = vst.msk [vmem:[#allocation2 + $0x8] sm:$0xff] %vm35, %v126
    // Predicated region
    $region14: #{tpu_custom_call.1} parent=1 // pred_check
      _
    $region15: #{tpu_custom_call.1} parent=1 // pred_check_branch
      %131 = sbr.rel (0) target = $region17
    $region16: #{tpu_custom_call.1} parent=1 // pred_region
      %133 = vsyncadd [#allocation3], 0
      %s134 = sshll.u32 [#allocation2], 4
      %s135 = int_to_ptr.vmem [resolvable:$true] %s134
      %s136 = sshll.u32 %s3, 4
      %s137 = int_to_ptr.hbm [resolvable:$true] %s136
      %142 = dma.vmem_to_hbm [thread:$0]  %s135, 256, %s137, [#allocation3], 128, 128, 8
    $region17: #{tpu_custom_call.1} parent=1 // pred_fallthru
      _
    // Predicated region
    $region18: #{tpu_custom_call.1} parent=1 // pred_check
      _
    $region19: #{tpu_custom_call.1} parent=1 // pred_check_branch
      %144 = sbr.rel (0) target = $region21
    $region20: #{tpu_custom_call.1} parent=1 // pred_region
      %146 = dma.done [#allocation3], 256
    $region21: #{tpu_custom_call.1} parent=1 // pred_fallthru
      _
    %147 = vsyncpa [#allocation3], 1

</llo_original>
